<compile_context>
chip_gen: v7x
topology: tpu7x:2x2x1
jax: 0.10.0
libtpu: 0.0.40
codegen_flags: <defaults>
</compile_context>

<pallas_src>
import math

import jax
import jax.numpy as jnp
from jax import lax
from jax.experimental import pallas as pl
from jax.experimental.pallas import tpu as pltpu

EPS = 1e-5
_LANE = 128


def _cdiv(a, b):
    return -(-a // b)


def _gbn_kernel(x_ref, gamma_ref, beta_ref, o_ref):
    """x_ref/o_ref: (G, VBS, TD); gamma_ref/beta_ref: (1, TD).

    Each of the G leading slices is an independent ghost batch; TD is a
    feature tile.  Per-chunk/per-feature statistics reduce over axis=1 only,
    so they are exact under both grid axes (chunks and features).
    """
    x = x_ref[...].astype(jnp.float32)                      # (G, VBS, TD)
    inv_n = 1.0 / x.shape[1]

    # Two-pass statistics in f32 (robust vs. E[x^2] - E[x]^2 cancellation).
    mean = jnp.sum(x, axis=1, keepdims=True) * inv_n        # (G, 1, TD)
    xc = x - mean
    var = jnp.sum(xc * xc, axis=1, keepdims=True) * inv_n   # biased variance
    inv_std = lax.rsqrt(var + EPS)                          # EUP slot (cheap)

    gamma = gamma_ref[...].astype(jnp.float32)[None]        # (1, 1, TD)
    beta = beta_ref[...].astype(jnp.float32)[None]          # (1, 1, TD)
    scale = inv_std * gamma                                  # (G, 1, TD)
    o_ref[...] = (xc * scale + beta).astype(o_ref.dtype)     # one FMA / element


def _hw_budget():
    """Returns (target f32 bytes per input tile, vmem_limit cap), gated on HW."""
    try:
        cap = int(pltpu.get_tpu_info().vmem_capacity_bytes)
    except Exception:
        cap = None
    if cap is not None and cap >= (100 << 20):
        # v5e / v6e: single TensorCore, 128 MiB VMEM -> bigger tiles are free.
        return 6 << 20, 80 << 20
    # v7x-safe defaults (64 MiB VMEM per TC) / unknown hardware.
    return 2 << 20, 40 << 20


def _pick_feature_tile(D, vbs, budget_elems):
    """Feature tile: a 128-multiple divisor of D when possible, else full D."""
    if D % _LANE != 0:
        # Keep the full (lane-sparse) feature dim: partial-lane vregs/stores
        # cost some VPU efficiency but zero extra HBM passes (memory-bound).
        return D
    units_total = D // _LANE
    max_units = max(1, budget_elems // (vbs * _LANE))
    best = 1
    for u in range(1, units_total + 1):
        if units_total % u == 0 and u <= max_units:
            best = u
    return best * _LANE


def gbn_forward(x, gamma, beta, virtual_batch_size, *, target_tile_bytes=None):
    """Ghost BatchNorm forward (training-mode statistics).

    x: (B, D), gamma: (D,), beta: (D,)
    """
    B, D = x.shape
    n_chunks = int(math.ceil(B / virtual_batch_size))
    # TODO(synk): torch.chunk allows a smaller ragged last chunk; only the even
    # split (the standard GBN configuration) is supported here.
    assert B % n_chunks == 0, "batch must split evenly into virtual batches"
    vbs = B // n_chunks

    # Pure views -- no packing, no transposes, no extra HBM passes.
    xr = x.reshape(n_chunks, vbs, D)
    gamma2 = gamma.reshape(1, D)
    beta2 = beta.reshape(1, D)

    default_tile_bytes, vmem_cap = _hw_budget()
    tile_bytes = int(target_tile_bytes) if target_tile_bytes else default_tile_bytes
    budget_elems = max(tile_bytes // 4, vbs * _LANE)        # budget in f32 elems

    td = _pick_feature_tile(D, vbs, budget_elems)
    n_ft = D // td

    # Ghost batches per grid step; no divisibility requirement (cdiv grid).
    g = max(1, min(budget_elems // (vbs * td), n_chunks))
    steps = _cdiv(n_chunks, g)
    # Prefer an even step count on the (parallel) chunk axis so v7x's two
    # TensorCores split the work evenly -- only when the tile shrink is <= 2x.
    if steps > 1 and steps % 2 == 1:
        g_alt = _cdiv(n_chunks, steps + 1)
        if 2 * g_alt >= g and _cdiv(n_chunks, g_alt) % 2 == 0:
            g = g_alt
            steps = _cdiv(n_chunks, g)

    itemsize = jnp.dtype(x.dtype).itemsize
    tile_io = g * vbs * td * itemsize
    tile_f32 = g * vbs * td * 4
    # Double-buffered in + out tiles, f32 working values, plus headroom.
    needed = 2 * (tile_io + tile_io) + 4 * tile_f32 + (2 << 20)
    vmem_limit = int(min(max(needed, 24 << 20), vmem_cap))

    # TODO(synk): running_mean / running_var momentum updates of BatchNorm1d are
    # training-time buffer side effects that do not affect this output; skipped.
    out = pl.pallas_call(
        _gbn_kernel,
        out_shape=jax.ShapeDtypeStruct((n_chunks, vbs, D), x.dtype),
        grid_spec=pltpu.PrefetchScalarGridSpec(
            num_scalar_prefetch=0,
            grid=(steps, n_ft),
            in_specs=[
                pl.BlockSpec((g, vbs, td), lambda i, j: (i, 0, j)),  # x tiles
                pl.BlockSpec((1, td), lambda i, j: (0, j)),          # gamma
                pl.BlockSpec((1, td), lambda i, j: (0, j)),          # beta
            ],
            out_specs=pl.BlockSpec((g, vbs, td), lambda i, j: (i, 0, j)),
        ),
        compiler_params=pltpu.CompilerParams(
            dimension_semantics=("parallel", "parallel"),
            vmem_limit_bytes=vmem_limit,
        ),
    )(xr, gamma2, beta2)

    return out.reshape(B, D)


def gbn_reference(x, gamma, beta, virtual_batch_size):
    """Pure-JAX reference mirroring the PyTorch forward."""
    B, D = x.shape
    n_chunks = int(math.ceil(B / virtual_batch_size))
    chunks = jnp.split(x.astype(jnp.float32), n_chunks, axis=0)
    outs = []
    for c in chunks:
        mean = jnp.mean(c, axis=0, keepdims=True)
        var = jnp.mean((c - mean) ** 2, axis=0, keepdims=True)
        xh = (c - mean) / jnp.sqrt(var + EPS)
        outs.append(xh * gamma[None, :] + beta[None, :])
    return jnp.concatenate(outs, axis=0).astype(x.dtype)


if __name__ == "__main__":
    def run_case(B, D, vbs_req, key, dtype=jnp.float32, tol=1e-4,
                 target_tile_bytes=None):
        kx, kg, kb = jax.random.split(key, 3)
        x = jax.random.normal(kx, (B, D), dtype=jnp.float32).astype(dtype)
        # BatchNorm1d default params are ones/zeros; perturb deterministically
        # to exercise the affine path.
        gamma = 1.0 + 0.1 * jax.random.normal(kg, (D,), dtype=jnp.float32)
        beta = 0.1 * jax.random.normal(kb, (D,), dtype=jnp.float32)

        out = jax.block_until_ready(
            gbn_forward(x, gamma, beta, vbs_req,
                        target_tile_bytes=target_tile_bytes))
        ref = gbn_reference(x, gamma, beta, vbs_req)
        assert out.shape == (B, D)
        err = float(jnp.max(jnp.abs(out.astype(jnp.float32)
                                    - ref.astype(jnp.float32))))
        assert err < tol, f"max abs err {err} (tol {tol})"

    key = jax.random.PRNGKey(0)
    k1, k2, k3, k4, k5 = jax.random.split(key, 5)
    # D=32 (< 128): lane-sparse feature dim, zero extra HBM passes.
    run_case(B=32, D=32, vbs_req=8, key=k1)
    # D=128 (lane-dense): whole problem in one tile.
    run_case(B=64, D=128, vbs_req=8, key=k2)
    # Tiny forced tile -> cdiv grid with a partial last chunk block (6 chunks, g=4).
    run_case(B=48, D=128, vbs_req=8, key=k3, target_tile_bytes=16 * 1024)
    # Tiny forced tile -> feature-axis tiling (td=128, grid (6, 2)).
    run_case(B=48, D=256, vbs_req=8, key=k4, target_tile_bytes=4 * 1024)
    # bf16 input: f32-accounted staging path, looser tolerance for bf16 output.
    run_case(B=64, D=128, vbs_req=16, key=k5, dtype=jnp.bfloat16, tol=5e-2)

    print("KERNEL_OK")
</pallas_src>

<mosaic_0001>
module attributes {stable_mosaic.version = 11 : i64} {
  func.func @_gbn_kernel(%arg0: i32, %arg1: i32, %arg2: memref<4x8x32xf32, #tpu.memory_space<vmem>>, %arg3: memref<1x32xf32, #tpu.memory_space<vmem>>, %arg4: memref<1x32xf32, #tpu.memory_space<vmem>>, %arg5: memref<4x8x32xf32, #tpu.memory_space<vmem>>) attributes {dimension_semantics = [#tpu.dimension_semantics<parallel>, #tpu.dimension_semantics<parallel>], iteration_bounds = array<i64: 1, 1>, scalar_prefetch = 0 : i64, scratch_operands = 0 : i64, tpu.core_type = #tpu.core_type<tc>, window_params = [{transform_indices = @transform_0, window_bounds = array<i64: 4, 8, 32>}, {transform_indices = @transform_1, window_bounds = array<i64: 1, 32>}, {transform_indices = @transform_2, window_bounds = array<i64: 1, 32>}, {transform_indices = @transform_3, window_bounds = array<i64: 4, 8, 32>}]} {
    %c0 = arith.constant 0 : index
    %c0_0 = arith.constant 0 : index
    %c0_1 = arith.constant 0 : index
    %0 = vector.load %arg2[%c0, %c0_0, %c0_1] : memref<4x8x32xf32, #tpu.memory_space<vmem>>, vector<4x8x32xf32>
    %cst = arith.constant dense<0.000000e+00> : vector<4x32xf32>
    %1 = vector.multi_reduction <add>, %0, %cst [1] : vector<4x8x32xf32> to vector<4x32xf32>
    %2 = vector.shape_cast %1 : vector<4x32xf32> to vector<4x1x32xf32>
    %cst_2 = arith.constant 1.250000e-01 : f32
    %3 = vector.broadcast %cst_2 : f32 to vector<4x1x32xf32>
    %4 = arith.mulf %2, %3 : vector<4x1x32xf32>
    %5 = vector.broadcast %4 : vector<4x1x32xf32> to vector<4x8x32xf32>
    %6 = arith.subf %0, %5 : vector<4x8x32xf32>
    %7 = arith.mulf %6, %6 : vector<4x8x32xf32>
    %cst_3 = arith.constant dense<0.000000e+00> : vector<4x32xf32>
    %8 = vector.multi_reduction <add>, %7, %cst_3 [1] : vector<4x8x32xf32> to vector<4x32xf32>
    %9 = vector.shape_cast %8 : vector<4x32xf32> to vector<4x1x32xf32>
    %cst_4 = arith.constant 1.250000e-01 : f32
    %10 = vector.broadcast %cst_4 : f32 to vector<4x1x32xf32>
    %11 = arith.mulf %9, %10 : vector<4x1x32xf32>
    %cst_5 = arith.constant 9.99999974E-6 : f32
    %12 = vector.broadcast %cst_5 : f32 to vector<4x1x32xf32>
    %13 = arith.addf %11, %12 : vector<4x1x32xf32>
    %14 = math.rsqrt %13 : vector<4x1x32xf32>
    %c0_6 = arith.constant 0 : index
    %c0_7 = arith.constant 0 : index
    %15 = vector.load %arg3[%c0_6, %c0_7] : memref<1x32xf32, #tpu.memory_space<vmem>>, vector<1x32xf32>
    %16 = vector.shape_cast %15 : vector<1x32xf32> to vector<1x1x32xf32>
    %c0_8 = arith.constant 0 : index
    %c0_9 = arith.constant 0 : index
    %17 = vector.load %arg4[%c0_8, %c0_9] : memref<1x32xf32, #tpu.memory_space<vmem>>, vector<1x32xf32>
    %18 = vector.shape_cast %17 : vector<1x32xf32> to vector<1x1x32xf32>
    %19 = vector.broadcast %16 : vector<1x1x32xf32> to vector<4x1x32xf32>
    %20 = arith.mulf %14, %19 : vector<4x1x32xf32>
    %21 = vector.broadcast %20 : vector<4x1x32xf32> to vector<4x8x32xf32>
    %22 = arith.mulf %6, %21 : vector<4x8x32xf32>
    %23 = vector.broadcast %18 : vector<1x1x32xf32> to vector<4x8x32xf32>
    %24 = arith.addf %22, %23 : vector<4x8x32xf32>
    %c0_10 = arith.constant 0 : index
    %c0_11 = arith.constant 0 : index
    %c0_12 = arith.constant 0 : index
    %25 = vector.load %arg5[%c0_10, %c0_11, %c0_12] : memref<4x8x32xf32, #tpu.memory_space<vmem>>, vector<4x8x32xf32>
    tpu.vector_store %arg5[%c0_10, %c0_11, %c0_12], %24 {strides = array<i32>} : memref<4x8x32xf32, #tpu.memory_space<vmem>>, vector<4x8x32xf32>,
    return
  }
  func.func @transform_0(%arg0: i32, %arg1: i32) -> (i32, i32, i32) {
    %c0_i32 = arith.constant 0 : i32
    %c0_i32_0 = arith.constant 0 : i32
    return %arg0, %c0_i32, %arg1 : i32, i32, i32
  }
  func.func @transform_1(%arg0: i32, %arg1: i32) -> (i32, i32) {
    %c0_i32 = arith.constant 0 : i32
    %c0_i32_0 = arith.constant 0 : i32
    return %c0_i32, %arg1 : i32, i32
  }
  func.func @transform_2(%arg0: i32, %arg1: i32) -> (i32, i32) {
    %c0_i32 = arith.constant 0 : i32
    %c0_i32_0 = arith.constant 0 : i32
    return %c0_i32, %arg1 : i32, i32
  }
  func.func @transform_3(%arg0: i32, %arg1: i32) -> (i32, i32, i32) {
    %c0_i32 = arith.constant 0 : i32
    %c0_i32_0 = arith.constant 0 : i32
    return %arg0, %c0_i32, %arg1 : i32, i32, i32
  }
}

</mosaic_0001>

<llo_original>
// kernel: tpu_custom_call.1
$region0: #{tpu_custom_call.1}
  #allocation0 [shape = 'u32[]', space=smem, size = 0x4, offset = 0x4, fixed_abs, tag = 'smem constant byte address 0x4 - core index']
  #allocation1 [shape = 'u32[144,128]{1,0:T(1,128)}', space=vmem, size = 0x12000, scoped, tag = 'internal scratch']
  %s0 = inlined_call_operand.hbm [shape: f32[4,8,32], index: 0, kind: input, shape index: {}]
  %s1 = inlined_call_operand.vmem [shape: f32[1,32], index: 1, kind: input, shape index: {}]
  %s2 = inlined_call_operand.vmem [shape: f32[1,32], index: 2, kind: input, shape index: {}]
  %s3 = inlined_call_operand.hbm [shape: f32[4,8,32], index: 3, kind: output, shape index: {}]
  %s4 = sld [smem:[#allocation0]]
  $region26: #{tpu_custom_call.1} parent=0
    _
  %s6 = ssub.s32 1, %s4
  %s7 = scalar_select 0, %s6, %s4
  $region1: #{tpu_custom_call.1} parent=0
    #allocation2 [shape = 'u8[16384]{0}', space=vmem, size = 0x4000, scoped, tag = 'input window, operand 0, single buffered']
    #allocation3 [shape = 's32[1]{0}', space=sflag, size = 0x4, scoped, tag = 'scoped memory for tpu_custom_call.1']
    #allocation4 [shape = 's32[1]{0}', space=sflag, size = 0x4, scoped, tag = 'scoped memory for tpu_custom_call.1']
    #allocation5 [shape = 'u8[16384]{0}', space=vmem, size = 0x4000, scoped, tag = 'output window, operand 0, single buffered']
    %8 = vsyncpa [#allocation3], 0
    %9 = vsyncpa [#allocation4], 0
    // Predicated region
    $region2: #{tpu_custom_call.1} parent=1 // pred_check
      _
    $region3: #{tpu_custom_call.1} parent=1 // pred_check_branch
      %11 = sbr.rel (0) target = $region5
    $region4: #{tpu_custom_call.1} parent=1 // pred_region
      %s13 = ssub.s32 512, 512
      %14 = vsyncadd [#allocation3], %s13
      %s15 = sshll.u32 [#allocation2], 4
      %s16 = int_to_ptr.vmem [resolvable:$true] %s15
      %21 = dma.hbm_to_vmem [thread:$0]  %s0, 512, %s16, [#allocation3], 128, 128, 8
    $region5: #{tpu_custom_call.1} parent=1 // pred_fallthru
      _
    // Predicated region
    $region6: #{tpu_custom_call.1} parent=1 // pred_check
      _
    $region7: #{tpu_custom_call.1} parent=1 // pred_check_branch
      %23 = sbr.rel (0) target = $region9
    $region8: #{tpu_custom_call.1} parent=1 // pred_region
      _
    $region9: #{tpu_custom_call.1} parent=1 // pred_fallthru
      _
    // Predicated region
    $region10: #{tpu_custom_call.1} parent=1 // pred_check
      _
    $region11: #{tpu_custom_call.1} parent=1 // pred_check_branch
      %25 = sbr.rel (0) target = $region13
    $region12: #{tpu_custom_call.1} parent=1 // pred_region
      _
    $region13: #{tpu_custom_call.1} parent=1 // pred_fallthru
      _
    // Predicated region
    $region14: #{tpu_custom_call.1} parent=1 // pred_check
      _
    $region15: #{tpu_custom_call.1} parent=1 // pred_check_branch
      %27 = sbr.rel (0) target = $region17
    $region16: #{tpu_custom_call.1} parent=1 // pred_region
      %28 = dma.done [#allocation3], 512
    $region17: #{tpu_custom_call.1} parent=1 // pred_fallthru
      _
    %v29 = vld [vmem:[#allocation2] sm:$0xff]
    %v30 = vld [vmem:[#allocation2 + $0x8] sm:$0xff]
    %v31 = vld [vmem:[#allocation2 + $0x10] sm:$0xff]
    %v32 = vld [vmem:[#allocation2 + $0x18] sm:$0xff]
    %vm33 = vcmask 261120
    %v34 = vsel %vm33, %v29, 0.0
    %v35 = vrot.slane %v34, 4
    %v36 = vadd.f32 %v34, %v35
    %v37 = vrot.slane %v36, 2
    %v38 = vadd.f32 %v36, %v37
    %v39 = vrot.slane %v38, 1
    %v40 = vadd.f32 %v38, %v39
    %v41 = vsel %vm33, %v30, 0.0
    %v42 = vrot.slane %v41, 4
    %v43 = vadd.f32 %v41, %v42
    %v44 = vrot.slane %v43, 2
    %v45 = vadd.f32 %v43, %v44
    %v46 = vrot.slane %v45, 1
    %v47 = vadd.f32 %v45, %v46
    %v48 = vsel %vm33, %v31, 0.0
    %v49 = vrot.slane %v48, 4
    %v50 = vadd.f32 %v48, %v49
    %v51 = vrot.slane %v50, 2
    %v52 = vadd.f32 %v50, %v51
    %v53 = vrot.slane %v52, 1
    %v54 = vadd.f32 %v52, %v53
    %v55 = vsel %vm33, %v32, 0.0
    %v56 = vrot.slane %v55, 4
    %v57 = vadd.f32 %v55, %v56
    %v58 = vrot.slane %v57, 2
    %v59 = vadd.f32 %v57, %v58
    %v60 = vrot.slane %v59, 1
    %v61 = vadd.f32 %v59, %v60
    %v62 = vmul.f32 %v40, 0.125
    %v63 = vmul.f32 %v47, 0.125
    %v64 = vmul.f32 %v54, 0.125
    %v65 = vmul.f32 %v61, 0.125
    %v66 = vsub.f32 %v29, %v62
    %v67 = vsub.f32 %v30, %v63
    %v68 = vsub.f32 %v31, %v64
    %v69 = vsub.f32 %v32, %v65
    %v70 = vmul.f32 %v66, %v66
    %v71 = vmul.f32 %v67, %v67
    %v72 = vmul.f32 %v68, %v68
    %v73 = vmul.f32 %v69, %v69
    %v74 = vsel %vm33, %v70, 0.0
    %v75 = vrot.slane %v74, 4
    %v76 = vadd.f32 %v74, %v75
    %v77 = vrot.slane %v76, 2
    %v78 = vadd.f32 %v76, %v77
    %v79 = vrot.slane %v78, 1
    %v80 = vadd.f32 %v78, %v79
    %v81 = vsel %vm33, %v71, 0.0
    %v82 = vrot.slane %v81, 4
    %v83 = vadd.f32 %v81, %v82
    %v84 = vrot.slane %v83, 2
    %v85 = vadd.f32 %v83, %v84
    %v86 = vrot.slane %v85, 1
    %v87 = vadd.f32 %v85, %v86
    %v88 = vsel %vm33, %v72, 0.0
    %v89 = vrot.slane %v88, 4
    %v90 = vadd.f32 %v88, %v89
    %v91 = vrot.slane %v90, 2
    %v92 = vadd.f32 %v90, %v91
    %v93 = vrot.slane %v92, 1
    %v94 = vadd.f32 %v92, %v93
    %v95 = vsel %vm33, %v73, 0.0
    %v96 = vrot.slane %v95, 4
    %v97 = vadd.f32 %v95, %v96
    %v98 = vrot.slane %v97, 2
    %v99 = vadd.f32 %v97, %v98
    %v100 = vrot.slane %v99, 1
    %v101 = vadd.f32 %v99, %v100
    %v102 = vmul.f32 %v80, 0.125
    %v103 = vmul.f32 %v87, 0.125
    %v104 = vmul.f32 %v94, 0.125
    %v105 = vmul.f32 %v101, 0.125
    %v106 = vadd.f32 %v102, 1e-05
    %v107 = vadd.f32 %v103, 1e-05
    %v108 = vadd.f32 %v104, 1e-05
    %v109 = vadd.f32 %v105, 1e-05
    %v110 = vrsqrt.pop %v106
    %v111 = vrsqrt.pop %v107
    %v112 = vrsqrt.pop %v108
    %v113 = vrsqrt.pop %v109
    %v114 = vld [vmem:[%s1] sm:$0x1]
    %v115 = vld [vmem:[%s2] sm:$0x1]
    %v116 = vmul.f32 %v110, %v114
    %v117 = vmul.f32 %v111, %v114
    %v118 = vmul.f32 %v112, %v114
    %v119 = vmul.f32 %v113, %v114
    %v120 = vlaneseq
    %v121 = vshrl.u32 %v120, 7
    %v122 = vsub.s32 0, %v121
    %v123 = vrot.slane %v116, %v122
    %v124 = vlaneseq
    %v125 = vshrl.u32 %v124, 7
    %v126 = vsub.s32 0, %v125
    %v127 = vrot.slane %v117, %v126
    %v128 = vlaneseq
    %v129 = vshrl.u32 %v128, 7
    %v130 = vsub.s32 0, %v129
    %v131 = vrot.slane %v118, %v130
    %v132 = vlaneseq
    %v133 = vshrl.u32 %v132, 7
    %v134 = vsub.s32 0, %v133
    %v135 = vrot.slane %v119, %v134
    %v136 = vmul.f32 %v66, %v123
    %v137 = vmul.f32 %v67, %v127
    %v138 = vmul.f32 %v68, %v131
    %v139 = vmul.f32 %v69, %v135
    %v141 = vlaneseq
    %v142 = vshrl.u32 %v141, 7
    %v143 = vsub.s32 0, %v142
    %v144 = vrot.slane %v115, %v143
    %v146 = vadd.f32 %v136, %v144
    %v147 = vadd.f32 %v137, %v144
    %v148 = vadd.f32 %v138, %v144
    %v149 = vadd.f32 %v139, %v144
    %150 = vst.msk [vmem:[#allocation5] sm:$0xff] %vm33, %v146
    %151 = vst.msk [vmem:[#allocation5 + $0x8] sm:$0xff] %vm33, %v147
    %152 = vst.msk [vmem:[#allocation5 + $0x10] sm:$0xff] %vm33, %v148
    %153 = vst.msk [vmem:[#allocation5 + $0x18] sm:$0xff] %vm33, %v149
    // Predicated region
    $region18: #{tpu_custom_call.1} parent=1 // pred_check
      _
    $region19: #{tpu_custom_call.1} parent=1 // pred_check_branch
      %155 = sbr.rel (0) target = $region21
    $region20: #{tpu_custom_call.1} parent=1 // pred_region
      %s157 = ssub.s32 512, 512
      %158 = vsyncadd [#allocation4], %s157
      %s159 = sshll.u32 [#allocation5], 4
      %s160 = int_to_ptr.vmem [resolvable:$true] %s159
      %165 = dma.vmem_to_hbm [thread:$0]  %s160, 512, %s3, [#allocation4], 128, 128, 8
    $region21: #{tpu_custom_call.1} parent=1 // pred_fallthru
      _
    // Predicated region
    $region22: #{tpu_custom_call.1} parent=1 // pred_check
      _
    $region23: #{tpu_custom_call.1} parent=1 // pred_check_branch
      %167 = sbr.rel (0) target = $region25
    $region24: #{tpu_custom_call.1} parent=1 // pred_region
      %168 = dma.done [#allocation4], 512
    $region25: #{tpu_custom_call.1} parent=1 // pred_fallthru
      _
    %169 = vsyncpa [#allocation3], 1
    %170 = vsyncpa [#allocation4], 1

</llo_original>
